<compile_context>
chip_gen: v7x
topology: tpu7x:2x2x1
jax: 0.10.0
libtpu: 0.0.40
codegen_flags: <defaults>
</compile_context>

<pallas_src>
import jax
import jax.numpy as jnp
from jax.experimental import pallas as pl
from jax.experimental.pallas import tpu as pltpu

_LANES = 1024       # lane-dense last dim (multiple of 128) -> unmasked stores
_TILE_ROWS = 512    # 512 x 1024 f32 tile = 2 MiB; 2 in-bufs + 2 out-bufs = 8 MiB VMEM


def _copy_kernel(x_ref, o_ref):
    # Pure tile copy (identity) on the current VMEM block.
    o_ref[...] = x_ref[...]


def cnn_rr_encoder_forward(x):
    """Module-faithful forward of CNN_RR_Encoder: identity, zero data movement."""
    return x


def cnn_rr_encoder_forward_pallas(x, *, donate=False):
    """Identity forward materialized through an optimized Pallas tiled HBM copy.

    Returns a tensor with identical shape, dtype and values to `x`.
    Set donate=True to alias the output onto the input HBM buffer
    (input_output_aliases) when the caller no longer needs `x`.
    """
    orig_shape = x.shape
    orig_dtype = x.dtype
    total = x.size
    if total == 0:
        return x

    flat = x.reshape(-1)

    # Lane-dense 2-D view: (rows, _LANES) with _LANES a large multiple of 128.
    rows = pl.cdiv(total, _LANES)
    if rows <= _TILE_ROWS:
        # Small tensor: one block covering the whole row extent
        # (block dim == full array dim, so the (8,128) rule is satisfied).
        tile_rows = rows
    else:
        tile_rows = _TILE_ROWS
        rows = pl.cdiv(rows, _TILE_ROWS) * _TILE_ROWS

    padded = rows * _LANES
    if padded != total:
        flat = jnp.pad(flat, (0, padded - total))
        donate = False  # padded temp can no longer alias the caller's buffer
    x2d = flat.reshape(rows, _LANES)

    grid_rows = rows // tile_rows
    size_bytes = padded * jnp.dtype(orig_dtype).itemsize

    out2d = pl.pallas_call(
        _copy_kernel,
        out_shape=jax.ShapeDtypeStruct((rows, _LANES), orig_dtype),
        grid_spec=pl.GridSpec(
            grid=(grid_rows,),
            in_specs=[pl.BlockSpec((tile_rows, _LANES), lambda i: (i, 0))],
            out_specs=pl.BlockSpec((tile_rows, _LANES), lambda i: (i, 0)),
        ),
        compiler_params=pltpu.CompilerParams(
            # Rows are independent -> shard across both TensorCores on v7x.
            dimension_semantics=("parallel",),
        ),
        # Zero-flop, bytes-only estimate so XLA schedules/overlaps this copy.
        cost_estimate=pl.CostEstimate(
            flops=0, transcendentals=0, bytes_accessed=2 * size_bytes),
        input_output_aliases=({0: 0} if donate else {}),
    )(x2d)

    out_flat = out2d.reshape(-1)
    if padded != total:
        out_flat = out_flat[:total]
    return out_flat.reshape(orig_shape)


if __name__ == "__main__":
    key = jax.random.PRNGKey(0)
    # NCHW input, consistent with a CNN encoder's expected layout.
    x = jax.random.normal(key, (2, 4, 16, 16), dtype=jnp.float32)

    # True module semantics: identity -> no kernel, no HBM traffic.
    y_ref = cnn_rr_encoder_forward(x)
    assert y_ref is x

    # Pallas-backed copy path (exercised here; donate=False so we can verify).
    y = cnn_rr_encoder_forward_pallas(x)
    y = jax.block_until_ready(y)

    assert y.shape == x.shape and y.dtype == x.dtype
    assert bool(jnp.all(y == x))
    print("KERNEL_OK")
</pallas_src>

<mosaic_0001>
module attributes {stable_mosaic.version = 11 : i64} {
  func.func @_copy_kernel(%arg0: i32, %arg1: memref<2x1024xf32, #tpu.memory_space<vmem>>, %arg2: memref<2x1024xf32, #tpu.memory_space<vmem>>) attributes {dimension_semantics = [#tpu.dimension_semantics<parallel>], iteration_bounds = array<i64: 1>, scalar_prefetch = 0 : i64, scratch_operands = 0 : i64, tpu.core_type = #tpu.core_type<tc>, window_params = [{transform_indices = @transform_0, window_bounds = array<i64: 2, 1024>}, {transform_indices = @transform_1, window_bounds = array<i64: 2, 1024>}]} {
    %c0 = arith.constant 0 : index
    %c0_0 = arith.constant 0 : index
    %0 = vector.load %arg1[%c0, %c0_0] : memref<2x1024xf32, #tpu.memory_space<vmem>>, vector<2x1024xf32>
    %c0_1 = arith.constant 0 : index
    %c0_2 = arith.constant 0 : index
    %1 = vector.load %arg2[%c0_1, %c0_2] : memref<2x1024xf32, #tpu.memory_space<vmem>>, vector<2x1024xf32>
    tpu.vector_store %arg2[%c0_1, %c0_2], %0 {strides = array<i32>} : memref<2x1024xf32, #tpu.memory_space<vmem>>, vector<2x1024xf32>,
    return
  }
  func.func @transform_0(%arg0: i32) -> (i32, i32) {
    %c0_i32 = arith.constant 0 : i32
    %c0_i32_0 = arith.constant 0 : i32
    return %arg0, %c0_i32 : i32, i32
  }
  func.func @transform_1(%arg0: i32) -> (i32, i32) {
    %c0_i32 = arith.constant 0 : i32
    %c0_i32_0 = arith.constant 0 : i32
    return %arg0, %c0_i32 : i32, i32
  }
}

</mosaic_0001>

<llo_original>
// kernel: tpu_custom_call.1
$region0: #{tpu_custom_call.1}
  #allocation0 [shape = 'u32[]', space=smem, size = 0x4, offset = 0x4, fixed_abs, tag = 'smem constant byte address 0x4 - core index']
  #allocation1 [shape = 'u32[144,128]{1,0:T(1,128)}', space=vmem, size = 0x12000, scoped, tag = 'internal scratch']
  %s0 = inlined_call_operand.hbm [shape: f32[2,1024], index: 0, kind: input, shape index: {}]
  %s1 = inlined_call_operand.hbm [shape: f32[2,1024], index: 1, kind: output, shape index: {}]
  %s2 = sld [smem:[#allocation0]]
  $region18: #{tpu_custom_call.1} parent=0
    _
  %s4 = ssub.s32 1, %s2
  %s5 = scalar_select 0, %s4, %s2
  $region1: #{tpu_custom_call.1} parent=0
    #allocation2 [shape = 'u8[8192]{0}', space=vmem, size = 0x2000, scoped, tag = 'input window, operand 0, single buffered']
    #allocation3 [shape = 's32[1]{0}', space=sflag, size = 0x4, scoped, tag = 'scoped memory for tpu_custom_call.1']
    #allocation4 [shape = 's32[1]{0}', space=sflag, size = 0x4, scoped, tag = 'scoped memory for tpu_custom_call.1']
    #allocation5 [shape = 'u8[8192]{0}', space=vmem, size = 0x2000, scoped, tag = 'output window, operand 0, single buffered']
    %6 = vsyncpa [#allocation3], 0
    %7 = vsyncpa [#allocation4], 0
    // Predicated region
    $region2: #{tpu_custom_call.1} parent=1 // pred_check
      _
    $region3: #{tpu_custom_call.1} parent=1 // pred_check_branch
      %9 = sbr.rel (0) target = $region5
    $region4: #{tpu_custom_call.1} parent=1 // pred_region
      %s11 = ssub.s32 256, 256
      %12 = vsyncadd [#allocation3], %s11
      %s14 = sshll.u32 [#allocation2], 4
      %s15 = int_to_ptr.vmem [resolvable:$true] %s14
      %17 = dma.hbm_to_vmem [thread:$0]  %s0, 256, %s15, [#allocation3]
    $region5: #{tpu_custom_call.1} parent=1 // pred_fallthru
      _
    // Predicated region
    $region6: #{tpu_custom_call.1} parent=1 // pred_check
      _
    $region7: #{tpu_custom_call.1} parent=1 // pred_check_branch
      %19 = sbr.rel (0) target = $region9
    $region8: #{tpu_custom_call.1} parent=1 // pred_region
      %20 = dma.done [#allocation3], 256
    $region9: #{tpu_custom_call.1} parent=1 // pred_fallthru
      _
    %v21 = vld [vmem:[#allocation2] sm:$0xff]
    %v22 = vld [vmem:[#allocation2 + $0x8] sm:$0xff]
    %23 = vst [vmem:[#allocation5] sm:$0xff] %v21
    %24 = vst [vmem:[#allocation5 + $0x8] sm:$0xff] %v22
    // Predicated region
    $region10: #{tpu_custom_call.1} parent=1 // pred_check
      _
    $region11: #{tpu_custom_call.1} parent=1 // pred_check_branch
      %26 = sbr.rel (0) target = $region13
    $region12: #{tpu_custom_call.1} parent=1 // pred_region
      %s28 = ssub.s32 256, 256
      %29 = vsyncadd [#allocation4], %s28
      %s31 = sshll.u32 [#allocation5], 4
      %s32 = int_to_ptr.vmem [resolvable:$true] %s31
      %34 = dma.vmem_to_hbm [thread:$0]  %s32, 256, %s1, [#allocation4]
    $region13: #{tpu_custom_call.1} parent=1 // pred_fallthru
      _
    // Predicated region
    $region14: #{tpu_custom_call.1} parent=1 // pred_check
      _
    $region15: #{tpu_custom_call.1} parent=1 // pred_check_branch
      %36 = sbr.rel (0) target = $region17
    $region16: #{tpu_custom_call.1} parent=1 // pred_region
      %37 = dma.done [#allocation4], 256
    $region17: #{tpu_custom_call.1} parent=1 // pred_fallthru
      _
    %38 = vsyncpa [#allocation3], 1
    %39 = vsyncpa [#allocation4], 1

</llo_original>
